<compile_context>
chip_gen: v6e
topology: v6e:2x2x1
jax: 0.10.0
libtpu: 0.0.40
codegen_flags: <defaults>
</compile_context>

<pallas_src>
import functools
import math

import jax
import jax.numpy as jnp
from jax.experimental import pallas as pl
from jax.experimental.pallas import tpu as pltpu

INF = 100000000
MU = 1e-05
TWO_PI = 2.0 * math.pi
VIEW_ANGLE = math.pi          # module default

_LANE = 128                   # lane width
_SUB_TILE = 8 * _LANE         # 1024: one full (8,128) vreg tile per feature row
_MAX_BLOCK_LANES = 8192       # cap on neighbour lanes per grid step
_TEMP_LIVE_F32 = 40           # conservative live f32 temporaries per (batch, lane)
_TEMP_VMEM_BUDGET = 8 << 20   # VMEM budget for those temporaries
_N_FEAT = 7                   # nx/ny last, first, prev + nei_sum
_N_ACC_ROWS = 10              # 7 numerators + 3 mask denominators
_OUT_LANES = 128              # lane-padded output width (sliced to 7 outside)


def _round_up(x, m):
    return ((x + m - 1) // m) * m


# ----------------------------------------------------------------------------
# atan2 built only from ops guaranteed to lower in Mosaic (mul/add/div/select).
# Cephes float32 minimax polynomial, ~few-ulp accuracy.
# ----------------------------------------------------------------------------
def _atan_01(z):
    """atan(z) for z in [0, 1]."""
    big = z > 0.4142135623730951                       # tan(pi/8)
    zr = jnp.where(big, (z - 1.0) / (z + 1.0), z)
    base = jnp.where(big, math.pi / 4.0, 0.0)
    z2 = zr * zr
    p = (((8.05374449538e-2 * z2 - 1.38776856032e-1) * z2
          + 1.99777106478e-1) * z2 - 3.33329491539e-1) * z2 * zr + zr
    return base + p


def _atan2(y, x):
    """Standard atan2(y, x), elementwise."""
    ax = jnp.abs(x)
    ay = jnp.abs(y)
    mn = jnp.minimum(ax, ay)
    mx = jnp.maximum(ax, ay)
    # Exact divide on purpose: keeps the strict '<' mask boundaries stable, and the
    # 1e-30 guard makes padded (0,0) lanes finite (0) instead of NaN.
    t = mn / jnp.maximum(mx, 1e-30)
    r = _atan_01(t)                                    # in [0, pi/4]
    r = jnp.where(ay > ax, math.pi / 2.0 - r, r)       # atan2(|y|, |x|) in [0, pi/2]
    r = jnp.where(x < 0.0, math.pi - r, r)
    r = jnp.where(y < 0.0, -r, r)
    return r


def _mod_2pi(a):
    # a comes from atan2 so a in [-pi, pi]; identical to torch's `a % (2*pi)` there.
    return jnp.where(a < 0.0, a + TWO_PI, a)


# ----------------------------------------------------------------------------
# Shared per-neighbour term computation.
#   All inputs are (B, n_sub, 128) except obs_dir which is (B, 1, 128) (row bcast).
#   Returns the ten term tensors whose sums feed the pooled outputs:
#     [0..6] numerators, [7..9] mask denominators (right, left, back).
# ----------------------------------------------------------------------------
def _compute_terms(obs_dir, nx_last, ny_last, nx_first, ny_first,
                   nx_prev, ny_prev, nei_sum, view_angle):
    f32 = jnp.float32
    nei_dir = _mod_2pi(_atan2(nx_last, ny_last))
    nei_move_dir = _mod_2pi(_atan2(nx_last - nx_prev, ny_last - ny_prev))

    nei_mask = (nei_sum < 0.05 * INF).astype(f32)      # padded lanes carry INF -> 0
    diff = nei_dir - obs_dir
    view_mask = (jnp.abs(diff) < view_angle / 2.0).astype(f32)
    left_view_mask = (diff > 0.0).astype(f32)
    right_view_mask = view_mask - left_view_mask       # can be -1 (faithful torch quirk)
    back_mask = 1.0 - view_mask
    nei_left = left_view_mask * nei_mask
    nei_right = right_view_mask * nei_mask
    nei_back = back_mask * nei_mask

    dis = jnp.sqrt(nx_last * nx_last + ny_last * ny_last)
    delta_dir = nei_move_dir - obs_dir
    vx = nx_last - nx_first
    vy = ny_last - ny_first
    velocity = jnp.sqrt(vx * vx + vy * vy)

    return (dis * nei_right, delta_dir * nei_right, velocity * nei_right,
            dis * nei_left, delta_dir * nei_left, velocity * nei_left,
            dis * nei_back,
            nei_right, nei_left, nei_back)


def _assemble_output(out_ref, num, den_r, den_l, den_b):
    """num: (1,7,1) batch-summed numerators; den_*: (B,1,1). Writes (B,1,128)."""
    cols = [num[:, 0:1, :] / den_r, num[:, 1:2, :] / den_r, num[:, 2:3, :] / den_r,
            num[:, 3:4, :] / den_l, num[:, 4:5, :] / den_l, num[:, 5:6, :] / den_l,
            num[:, 6:7, :] / den_b]                                # each (B,1,1)
    b = out_ref.shape[0]
    pad = jnp.zeros((b, 1, out_ref.shape[2] - 7), jnp.float32)
    out_ref[...] = jnp.concatenate(cols + [pad], axis=-1)          # (B,1,128) full store


# ----------------------------------------------------------------------------
# Single-block kernel (the common case): whole neighbour axis in one step,
# no scratch, no pl.when, everything in registers.
# ----------------------------------------------------------------------------
def _conception_kernel_single(obs_ref, feat_ref, out_ref, *, view_angle):
    obs_dir = obs_ref[...]                                         # (B, 1, 128)
    terms = _compute_terms(obs_dir,
                           feat_ref[0], feat_ref[1], feat_ref[2], feat_ref[3],
                           feat_ref[4], feat_ref[5], feat_ref[6], view_angle)

    def red(t):                                                    # (B,ns,128) -> (B,1,1)
        return jnp.sum(jnp.sum(t, axis=1, keepdims=True), axis=2, keepdims=True)

    sums = [red(t) for t in terms]                                 # ten (B,1,1)
    # torch quirk: numerators summed over batch AND neighbours; per-batch denominator.
    num = jnp.concatenate(
        [jnp.sum(sums[k], axis=0, keepdims=True) for k in range(7)], axis=1)  # (1,7,1)
    _assemble_output(out_ref, num, sums[7] + MU, sums[8] + MU, sums[9] + MU)


# ----------------------------------------------------------------------------
# Multi-block fallback for very large N: "arbitrary" grid over neighbour tiles,
# lane-dense (B, 10, 128) accumulator; cross-lane reduce + divides only at the end.
# ----------------------------------------------------------------------------
def _conception_kernel_multi(obs_ref, feat_ref, out_ref, acc_ref, *, view_angle):
    step = pl.program_id(0)

    @pl.when(step == 0)
    def _init():
        acc_ref[...] = jnp.zeros_like(acc_ref)

    obs_dir = obs_ref[...]                                         # (B, 1, 128)
    terms = _compute_terms(obs_dir,
                           feat_ref[0], feat_ref[1], feat_ref[2], feat_ref[3],
                           feat_ref[4], feat_ref[5], feat_ref[6], view_angle)

    # Lane-dense accumulation: sublane-reduce each term to (B,1,128) and add it to
    # its accumulator row (full-lane stores; no per-step cross-lane reduce).
    for k, t in enumerate(terms):
        acc_ref[:, k:k + 1, :] += jnp.sum(t, axis=1, keepdims=True)

    @pl.when(step == pl.num_programs(0) - 1)
    def _finalize():
        red = jnp.sum(acc_ref[...], axis=-1, keepdims=True)        # (B,10,1) one XLU reduce
        num = jnp.sum(red[:, 0:7, :], axis=0, keepdims=True)       # (1,7,1) torch quirk
        _assemble_output(out_ref, num,
                         red[:, 7:8, :] + MU, red[:, 8:9, :] + MU, red[:, 9:10, :] + MU)

    # TODO(synk): use_max branch of forward() not implemented (shape-inconsistent in the
    # reference and unreachable with default flags); implement() depends on an external
    # Model class and is out of scope.


# ----------------------------------------------------------------------------
# Wrapper: pure layout/slicing prep (no big-tensor transpose) + pallas_call.
# Jitted so the prep fuses into a handful of XLA fusions.
# ----------------------------------------------------------------------------
@functools.partial(jax.jit, static_argnames=("view_angle", "block_lanes"))
def conception_pallas(trajs, nei_trajs, view_angle=VIEW_ANGLE, block_lanes=None):
    B, T, _ = trajs.shape
    _, N, _, _ = nei_trajs.shape
    trajs = trajs.astype(jnp.float32)
    nei = nei_trajs.astype(jnp.float32)

    # ---- Neighbour tile width (lanes): multiple of 1024 so every feature view is
    # full (8,128) vreg tiles; prefer one block covering all of N, bounded so the
    # block + live temporaries fit comfortably in scoped VMEM on v7x (64 MiB phys).
    cap = (_TEMP_VMEM_BUDGET // (_TEMP_LIVE_F32 * 4 * B)) // _SUB_TILE * _SUB_TILE
    if block_lanes is None:
        want = _round_up(max(N, 1), _SUB_TILE)
        block_lanes = int(max(_SUB_TILE, min(want, _MAX_BLOCK_LANES, cap)))
    else:
        block_lanes = int(_round_up(max(int(block_lanes), 1), _SUB_TILE))
    n_pad = _round_up(max(N, 1), block_lanes)
    n_blocks = n_pad // block_lanes
    ns_blk = block_lanes // _LANE
    ns_total = n_pad // _LANE

    # ---- Feature packing: six key trajectory points + the full-trajectory sum, all
    # straight slices / one reduce in the natural (B, N, T, 2) layout, repacked so the
    # neighbour axis spans sublane x lane.
    def pack(row, fill):                                            # (B,N) -> (B,ns,128)
        if n_pad != N:
            row = jnp.pad(row, ((0, 0), (0, n_pad - N)), constant_values=fill)
        return row.reshape(B, ns_total, _LANE)

    nei_sum = jnp.sum(nei, axis=(-1, -2))                           # (B, N)
    feat = jnp.stack(
        [pack(nei[:, :, T - 1, 0], 0.0),        # nx_last
         pack(nei[:, :, T - 1, 1], 0.0),        # ny_last
         pack(nei[:, :, 0, 0], 0.0),            # nx_first
         pack(nei[:, :, 0, 1], 0.0),            # ny_first
         pack(nei[:, :, T - 2, 0], 0.0),        # nx_prev
         pack(nei[:, :, T - 2, 1], 0.0),        # ny_prev
         pack(nei_sum, float(INF))],            # padded lanes look "empty" -> masked out
        axis=0)                                                      # (7, B, ns_total, 128)

    # Only 4 scalars of `trajs` are ever used -> compute obs_dir here; one 128-lane row
    # per batch instead of a BxN broadcast.
    obs_dx = trajs[:, T - 1, 0] - trajs[:, T - 2, 0]
    obs_dy = trajs[:, T - 1, 1] - trajs[:, T - 2, 1]
    obs_dir = jnp.mod(jnp.arctan2(obs_dx, obs_dy), TWO_PI)           # (B,)
    obs_row = jnp.broadcast_to(obs_dir[:, None, None],
                               (B, 1, _LANE)).astype(jnp.float32)    # (B, 1, 128)

    feat_block_bytes = _N_FEAT * B * block_lanes * 4
    vmem_limit = int(min(32 << 20,
                         max(8 << 20,
                             2 * feat_block_bytes
                             + _TEMP_LIVE_F32 * 4 * B * block_lanes + (1 << 20))))
    cparams = pltpu.CompilerParams(dimension_semantics=("arbitrary",),
                                   vmem_limit_bytes=vmem_limit)
    obs_spec = pl.BlockSpec((B, 1, _LANE), lambda i: (0, 0, 0))
    out_spec = pl.BlockSpec((B, 1, _OUT_LANES), lambda i: (0, 0, 0))
    out_shape = jax.ShapeDtypeStruct((B, 1, _OUT_LANES), jnp.float32)

    if n_blocks == 1:
        kernel = functools.partial(_conception_kernel_single, view_angle=float(view_angle))
        out_padded = pl.pallas_call(
            kernel, out_shape=out_shape, grid=(1,),
            in_specs=[obs_spec,
                      pl.BlockSpec((_N_FEAT, B, ns_total, _LANE), lambda i: (0, 0, 0, 0))],
            out_specs=out_spec,
            compiler_params=cparams,
        )(obs_row, feat)
    else:
        kernel = functools.partial(_conception_kernel_multi, view_angle=float(view_angle))
        out_padded = pl.pallas_call(
            kernel, out_shape=out_shape, grid=(n_blocks,),
            in_specs=[obs_spec,
                      pl.BlockSpec((_N_FEAT, B, ns_blk, _LANE), lambda i: (0, 0, i, 0))],
            out_specs=out_spec,
            scratch_shapes=[pltpu.VMEM((B, _N_ACC_ROWS, _LANE), jnp.float32)],
            compiler_params=cparams,
        )(obs_row, feat)
    return out_padded[:, :, :7]                                      # (B, 1, 7)


# ----------------------------------------------------------------------------
# Plain-JAX reference mirroring the PyTorch forward (pooling branch).
# ----------------------------------------------------------------------------
def conception_reference(trajs, nei_trajs, view_angle=VIEW_ANGLE):
    nei_vector = nei_trajs[..., -1, :] - nei_trajs[..., 0, :]
    nei_pos = nei_trajs[..., -1, :]
    obs_dir_vec = trajs[..., -1:, :] - trajs[..., -2:-1, :]
    obs_dir = jnp.mod(jnp.arctan2(obs_dir_vec[..., 0], obs_dir_vec[..., 1]), TWO_PI)  # (B,1)
    nei_dir = jnp.mod(jnp.arctan2(nei_pos[..., 0], nei_pos[..., 1]), TWO_PI)          # (B,N)
    nei_mask = (jnp.sum(nei_trajs, axis=(-1, -2)) < 0.05 * INF).astype(jnp.int32)
    view_mask = (jnp.abs(nei_dir - obs_dir) < view_angle / 2).astype(jnp.int32)
    left_view_mask = (nei_dir - obs_dir > 0).astype(jnp.int32)
    right_view_mask = view_mask - left_view_mask
    back_mask = 1 - view_mask
    nei_left = left_view_mask * nei_mask
    nei_right = right_view_mask * nei_mask
    nei_back = back_mask * nei_mask
    dis = jnp.linalg.norm(nei_pos, axis=-1)
    move_vec = nei_trajs[..., -1, :] - nei_trajs[..., -2, :]
    nei_move_dir = jnp.mod(jnp.arctan2(move_vec[..., 0], move_vec[..., 1]), TWO_PI)
    delta_dir = nei_move_dir - obs_dir
    velocity = jnp.linalg.norm(nei_vector, axis=-1)

    def pool(v, m):
        return jnp.sum(v * m) / (jnp.sum(m, axis=-1) + MU)                 # (B,)

    con_right = jnp.stack([pool(dis, nei_right), pool(delta_dir, nei_right),
                           pool(velocity, nei_right)], axis=-1)            # (B,3)
    con_left = jnp.stack([pool(dis, nei_left), pool(delta_dir, nei_left),
                          pool(velocity, nei_left)], axis=-1)              # (B,3)
    con_back = pool(dis, nei_back)[:, None]                                # (B,1)
    return jnp.concatenate([con_right, con_left, con_back], axis=-1)[:, None, :]


if __name__ == "__main__":
    key = jax.random.PRNGKey(0)

    # 1) Default small shape (single-block path); one neighbour marked "empty" (INF),
    #    as the group preprocessing does.
    B, N, T = 2, 8, 8
    k1, k2 = jax.random.split(key)
    trajs = 2.0 * jax.random.normal(k1, (B, T, 2), jnp.float32)
    nei_trajs = 2.0 * jax.random.normal(k2, (B, N, T, 2), jnp.float32)
    nei_trajs = nei_trajs.at[0, N - 1].set(float(INF))

    out = jax.block_until_ready(conception_pallas(trajs, nei_trajs))
    assert out.shape == (B, 1, 7), out.shape
    ref = conception_reference(trajs, nei_trajs)
    assert bool(jnp.allclose(out, ref, rtol=2e-2, atol=2e-3)), (
        f"max abs err = {float(jnp.max(jnp.abs(out - ref)))}")

    # 2) Realistic neighbour count: still ONE grid block after the grid collapse.
    B2, N2, T2 = 3, 600, 12
    k3, k4 = jax.random.split(k2)
    trajs2 = 2.0 * jax.random.normal(k3, (B2, T2, 2), jnp.float32)
    nei_trajs2 = 2.0 * jax.random.normal(k4, (B2, N2, T2, 2), jnp.float32)
    nei_trajs2 = nei_trajs2.at[1, 0].set(float(INF))

    out2 = jax.block_until_ready(conception_pallas(trajs2, nei_trajs2))
    assert out2.shape == (B2, 1, 7), out2.shape
    ref2 = conception_reference(trajs2, nei_trajs2)
    assert bool(jnp.allclose(out2, ref2, rtol=2e-2, atol=2e-3)), (
        f"max abs err = {float(jnp.max(jnp.abs(out2 - ref2)))}")

    # 3) Force the multi-block (lane-dense accumulator) path with a small tile override.
    B3, N3, T3 = 2, 2500, 6
    k5, k6 = jax.random.split(k4)
    trajs3 = 2.0 * jax.random.normal(k5, (B3, T3, 2), jnp.float32)
    nei_trajs3 = 2.0 * jax.random.normal(k6, (B3, N3, T3, 2), jnp.float32)
    nei_trajs3 = nei_trajs3.at[0, 3].set(float(INF))

    out3 = jax.block_until_ready(conception_pallas(trajs3, nei_trajs3, block_lanes=1024))
    assert out3.shape == (B3, 1, 7), out3.shape
    ref3 = conception_reference(trajs3, nei_trajs3)
    assert bool(jnp.allclose(out3, ref3, rtol=2e-2, atol=2e-3)), (
        f"max abs err = {float(jnp.max(jnp.abs(out3 - ref3)))}")

    print("KERNEL_OK")
</pallas_src>

<mosaic_0001>
module attributes {stable_mosaic.version = 11 : i64} {
  func.func @_conception_kernel_single(%arg0: i32, %arg1: memref<2x1x128xf32, #tpu.memory_space<vmem>>, %arg2: memref<7x2x8x128xf32, #tpu.memory_space<vmem>>, %arg3: memref<2x1x128xf32, #tpu.memory_space<vmem>>) attributes {dimension_semantics = [#tpu.dimension_semantics<arbitrary>], iteration_bounds = array<i64: 1>, scalar_prefetch = 0 : i64, scratch_operands = 0 : i64, tpu.core_type = #tpu.core_type<tc>, window_params = [{pipeline_mode = #tpu.pipeline_mode<synchronous>, transform_indices = @transform_0, window_bounds = array<i64: 2, 1, 128>}, {pipeline_mode = #tpu.pipeline_mode<synchronous>, transform_indices = @transform_1, window_bounds = array<i64: 7, 2, 8, 128>}, {pipeline_mode = #tpu.pipeline_mode<synchronous>, transform_indices = @transform_2, window_bounds = array<i64: 2, 1, 128>}]} {
    %c0 = arith.constant 0 : index
    %c0_0 = arith.constant 0 : index
    %c0_1 = arith.constant 0 : index
    %0 = vector.load %arg1[%c0, %c0_0, %c0_1] : memref<2x1x128xf32, #tpu.memory_space<vmem>>, vector<2x1x128xf32>
    %c0_2 = arith.constant 0 : index
    %c0_3 = arith.constant 0 : index
    %c0_4 = arith.constant 0 : index
    %c0_5 = arith.constant 0 : index
    %1 = vector.load %arg2[%c0_2, %c0_3, %c0_4, %c0_5] : memref<7x2x8x128xf32, #tpu.memory_space<vmem>>, vector<1x2x8x128xf32>
    %2 = vector.shape_cast %1 : vector<1x2x8x128xf32> to vector<2x8x128xf32>
    %c1 = arith.constant 1 : index
    %c0_6 = arith.constant 0 : index
    %c0_7 = arith.constant 0 : index
    %c0_8 = arith.constant 0 : index
    %3 = vector.load %arg2[%c1, %c0_6, %c0_7, %c0_8] : memref<7x2x8x128xf32, #tpu.memory_space<vmem>>, vector<1x2x8x128xf32>
    %4 = vector.shape_cast %3 : vector<1x2x8x128xf32> to vector<2x8x128xf32>
    %c2 = arith.constant 2 : index
    %c0_9 = arith.constant 0 : index
    %c0_10 = arith.constant 0 : index
    %c0_11 = arith.constant 0 : index
    %5 = vector.load %arg2[%c2, %c0_9, %c0_10, %c0_11] : memref<7x2x8x128xf32, #tpu.memory_space<vmem>>, vector<1x2x8x128xf32>
    %6 = vector.shape_cast %5 : vector<1x2x8x128xf32> to vector<2x8x128xf32>
    %c3 = arith.constant 3 : index
    %c0_12 = arith.constant 0 : index
    %c0_13 = arith.constant 0 : index
    %c0_14 = arith.constant 0 : index
    %7 = vector.load %arg2[%c3, %c0_12, %c0_13, %c0_14] : memref<7x2x8x128xf32, #tpu.memory_space<vmem>>, vector<1x2x8x128xf32>
    %8 = vector.shape_cast %7 : vector<1x2x8x128xf32> to vector<2x8x128xf32>
    %c4 = arith.constant 4 : index
    %c0_15 = arith.constant 0 : index
    %c0_16 = arith.constant 0 : index
    %c0_17 = arith.constant 0 : index
    %9 = vector.load %arg2[%c4, %c0_15, %c0_16, %c0_17] : memref<7x2x8x128xf32, #tpu.memory_space<vmem>>, vector<1x2x8x128xf32>
    %10 = vector.shape_cast %9 : vector<1x2x8x128xf32> to vector<2x8x128xf32>
    %c5 = arith.constant 5 : index
    %c0_18 = arith.constant 0 : index
    %c0_19 = arith.constant 0 : index
    %c0_20 = arith.constant 0 : index
    %11 = vector.load %arg2[%c5, %c0_18, %c0_19, %c0_20] : memref<7x2x8x128xf32, #tpu.memory_space<vmem>>, vector<1x2x8x128xf32>
    %12 = vector.shape_cast %11 : vector<1x2x8x128xf32> to vector<2x8x128xf32>
    %c6 = arith.constant 6 : index
    %c0_21 = arith.constant 0 : index
    %c0_22 = arith.constant 0 : index
    %c0_23 = arith.constant 0 : index
    %13 = vector.load %arg2[%c6, %c0_21, %c0_22, %c0_23] : memref<7x2x8x128xf32, #tpu.memory_space<vmem>>, vector<1x2x8x128xf32>
    %14 = vector.shape_cast %13 : vector<1x2x8x128xf32> to vector<2x8x128xf32>
    %15 = math.absf %4 : vector<2x8x128xf32>
    %16 = math.absf %2 : vector<2x8x128xf32>
    %17 = arith.minimumf %15, %16 : vector<2x8x128xf32>
    %18 = arith.maximumf %15, %16 : vector<2x8x128xf32>
    %cst = arith.constant 1.000000e-30 : f32
    %19 = vector.broadcast %cst : f32 to vector<2x8x128xf32>
    %20 = arith.maximumf %18, %19 : vector<2x8x128xf32>
    %21 = arith.divf %17, %20 : vector<2x8x128xf32>
    %cst_24 = arith.constant 0.414213568 : f32
    %22 = vector.broadcast %cst_24 : f32 to vector<2x8x128xf32>
    %23 = arith.cmpf ogt, %21, %22 : vector<2x8x128xf32>
    %cst_25 = arith.constant 1.000000e+00 : f32
    %24 = vector.broadcast %cst_25 : f32 to vector<2x8x128xf32>
    %25 = arith.subf %21, %24 : vector<2x8x128xf32>
    %cst_26 = arith.constant 1.000000e+00 : f32
    %26 = vector.broadcast %cst_26 : f32 to vector<2x8x128xf32>
    %27 = arith.addf %21, %26 : vector<2x8x128xf32>
    %28 = arith.divf %25, %27 : vector<2x8x128xf32>
    %29 = arith.select %23, %28, %21 : vector<2x8x128xi1>, vector<2x8x128xf32>
    %cst_27 = arith.constant 0.785398185 : f32
    %cst_28 = arith.constant 0.000000e+00 : f32
    %30 = vector.broadcast %cst_27 : f32 to vector<2x8x128xf32>
    %31 = vector.broadcast %cst_28 : f32 to vector<2x8x128xf32>
    %32 = arith.select %23, %30, %31 : vector<2x8x128xi1>, vector<2x8x128xf32>
    %33 = arith.mulf %29, %29 : vector<2x8x128xf32>
    %cst_29 = arith.constant 0.0805374458 : f32
    %34 = vector.broadcast %cst_29 : f32 to vector<2x8x128xf32>
    %35 = arith.mulf %34, %33 : vector<2x8x128xf32>
    %cst_30 = arith.constant 0.138776854 : f32
    %36 = vector.broadcast %cst_30 : f32 to vector<2x8x128xf32>
    %37 = arith.subf %35, %36 : vector<2x8x128xf32>
    %38 = arith.mulf %37, %33 : vector<2x8x128xf32>
    %cst_31 = arith.constant 0.199777111 : f32
    %39 = vector.broadcast %cst_31 : f32 to vector<2x8x128xf32>
    %40 = arith.addf %38, %39 : vector<2x8x128xf32>
    %41 = arith.mulf %40, %33 : vector<2x8x128xf32>
    %cst_32 = arith.constant 0.333329499 : f32
    %42 = vector.broadcast %cst_32 : f32 to vector<2x8x128xf32>
    %43 = arith.subf %41, %42 : vector<2x8x128xf32>
    %44 = arith.mulf %43, %33 : vector<2x8x128xf32>
    %45 = arith.mulf %44, %29 : vector<2x8x128xf32>
    %46 = arith.addf %45, %29 : vector<2x8x128xf32>
    %47 = arith.addf %32, %46 : vector<2x8x128xf32>
    %48 = arith.cmpf ogt, %16, %15 : vector<2x8x128xf32>
    %cst_33 = arith.constant 1.57079637 : f32
    %49 = vector.broadcast %cst_33 : f32 to vector<2x8x128xf32>
    %50 = arith.subf %49, %47 : vector<2x8x128xf32>
    %51 = arith.select %48, %50, %47 : vector<2x8x128xi1>, vector<2x8x128xf32>
    %cst_34 = arith.constant 0.000000e+00 : f32
    %52 = vector.broadcast %cst_34 : f32 to vector<2x8x128xf32>
    %53 = arith.cmpf olt, %4, %52 : vector<2x8x128xf32>
    %cst_35 = arith.constant 3.14159274 : f32
    %54 = vector.broadcast %cst_35 : f32 to vector<2x8x128xf32>
    %55 = arith.subf %54, %51 : vector<2x8x128xf32>
    %56 = arith.select %53, %55, %51 : vector<2x8x128xi1>, vector<2x8x128xf32>
    %cst_36 = arith.constant 0.000000e+00 : f32
    %57 = vector.broadcast %cst_36 : f32 to vector<2x8x128xf32>
    %58 = arith.cmpf olt, %2, %57 : vector<2x8x128xf32>
    %cst_37 = arith.constant 0.000000e+00 : f32
    %59 = vector.broadcast %cst_37 : f32 to vector<2x8x128xf32>
    %60 = arith.subf %59, %56 : vector<2x8x128xf32>
    %61 = arith.select %58, %60, %56 : vector<2x8x128xi1>, vector<2x8x128xf32>
    %cst_38 = arith.constant 0.000000e+00 : f32
    %62 = vector.broadcast %cst_38 : f32 to vector<2x8x128xf32>
    %63 = arith.cmpf olt, %61, %62 : vector<2x8x128xf32>
    %cst_39 = arith.constant 6.28318548 : f32
    %64 = vector.broadcast %cst_39 : f32 to vector<2x8x128xf32>
    %65 = arith.addf %61, %64 : vector<2x8x128xf32>
    %66 = arith.select %63, %65, %61 : vector<2x8x128xi1>, vector<2x8x128xf32>
    %67 = arith.subf %2, %10 : vector<2x8x128xf32>
    %68 = arith.subf %4, %12 : vector<2x8x128xf32>
    %69 = math.absf %68 : vector<2x8x128xf32>
    %70 = math.absf %67 : vector<2x8x128xf32>
    %71 = arith.minimumf %69, %70 : vector<2x8x128xf32>
    %72 = arith.maximumf %69, %70 : vector<2x8x128xf32>
    %cst_40 = arith.constant 1.000000e-30 : f32
    %73 = vector.broadcast %cst_40 : f32 to vector<2x8x128xf32>
    %74 = arith.maximumf %72, %73 : vector<2x8x128xf32>
    %75 = arith.divf %71, %74 : vector<2x8x128xf32>
    %cst_41 = arith.constant 0.414213568 : f32
    %76 = vector.broadcast %cst_41 : f32 to vector<2x8x128xf32>
    %77 = arith.cmpf ogt, %75, %76 : vector<2x8x128xf32>
    %cst_42 = arith.constant 1.000000e+00 : f32
    %78 = vector.broadcast %cst_42 : f32 to vector<2x8x128xf32>
    %79 = arith.subf %75, %78 : vector<2x8x128xf32>
    %cst_43 = arith.constant 1.000000e+00 : f32
    %80 = vector.broadcast %cst_43 : f32 to vector<2x8x128xf32>
    %81 = arith.addf %75, %80 : vector<2x8x128xf32>
    %82 = arith.divf %79, %81 : vector<2x8x128xf32>
    %83 = arith.select %77, %82, %75 : vector<2x8x128xi1>, vector<2x8x128xf32>
    %cst_44 = arith.constant 0.785398185 : f32
    %cst_45 = arith.constant 0.000000e+00 : f32
    %84 = vector.broadcast %cst_44 : f32 to vector<2x8x128xf32>
    %85 = vector.broadcast %cst_45 : f32 to vector<2x8x128xf32>
    %86 = arith.select %77, %84, %85 : vector<2x8x128xi1>, vector<2x8x128xf32>
    %87 = arith.mulf %83, %83 : vector<2x8x128xf32>
    %cst_46 = arith.constant 0.0805374458 : f32
    %88 = vector.broadcast %cst_46 : f32 to vector<2x8x128xf32>
    %89 = arith.mulf %88, %87 : vector<2x8x128xf32>
    %cst_47 = arith.constant 0.138776854 : f32
    %90 = vector.broadcast %cst_47 : f32 to vector<2x8x128xf32>
    %91 = arith.subf %89, %90 : vector<2x8x128xf32>
    %92 = arith.mulf %91, %87 : vector<2x8x128xf32>
    %cst_48 = arith.constant 0.199777111 : f32
    %93 = vector.broadcast %cst_48 : f32 to vector<2x8x128xf32>
    %94 = arith.addf %92, %93 : vector<2x8x128xf32>
    %95 = arith.mulf %94, %87 : vector<2x8x128xf32>
    %cst_49 = arith.constant 0.333329499 : f32
    %96 = vector.broadcast %cst_49 : f32 to vector<2x8x128xf32>
    %97 = arith.subf %95, %96 : vector<2x8x128xf32>
    %98 = arith.mulf %97, %87 : vector<2x8x128xf32>
    %99 = arith.mulf %98, %83 : vector<2x8x128xf32>
    %100 = arith.addf %99, %83 : vector<2x8x128xf32>
    %101 = arith.addf %86, %100 : vector<2x8x128xf32>
    %102 = arith.cmpf ogt, %70, %69 : vector<2x8x128xf32>
    %cst_50 = arith.constant 1.57079637 : f32
    %103 = vector.broadcast %cst_50 : f32 to vector<2x8x128xf32>
    %104 = arith.subf %103, %101 : vector<2x8x128xf32>
    %105 = arith.select %102, %104, %101 : vector<2x8x128xi1>, vector<2x8x128xf32>
    %cst_51 = arith.constant 0.000000e+00 : f32
    %106 = vector.broadcast %cst_51 : f32 to vector<2x8x128xf32>
    %107 = arith.cmpf olt, %68, %106 : vector<2x8x128xf32>
    %cst_52 = arith.constant 3.14159274 : f32
    %108 = vector.broadcast %cst_52 : f32 to vector<2x8x128xf32>
    %109 = arith.subf %108, %105 : vector<2x8x128xf32>
    %110 = arith.select %107, %109, %105 : vector<2x8x128xi1>, vector<2x8x128xf32>
    %cst_53 = arith.constant 0.000000e+00 : f32
    %111 = vector.broadcast %cst_53 : f32 to vector<2x8x128xf32>
    %112 = arith.cmpf olt, %67, %111 : vector<2x8x128xf32>
    %cst_54 = arith.constant 0.000000e+00 : f32
    %113 = vector.broadcast %cst_54 : f32 to vector<2x8x128xf32>
    %114 = arith.subf %113, %110 : vector<2x8x128xf32>
    %115 = arith.select %112, %114, %110 : vector<2x8x128xi1>, vector<2x8x128xf32>
    %cst_55 = arith.constant 0.000000e+00 : f32
    %116 = vector.broadcast %cst_55 : f32 to vector<2x8x128xf32>
    %117 = arith.cmpf olt, %115, %116 : vector<2x8x128xf32>
    %cst_56 = arith.constant 6.28318548 : f32
    %118 = vector.broadcast %cst_56 : f32 to vector<2x8x128xf32>
    %119 = arith.addf %115, %118 : vector<2x8x128xf32>
    %120 = arith.select %117, %119, %115 : vector<2x8x128xi1>, vector<2x8x128xf32>
    %cst_57 = arith.constant 5.000000e+06 : f32
    %121 = vector.broadcast %cst_57 : f32 to vector<2x8x128xf32>
    %122 = arith.cmpf olt, %14, %121 : vector<2x8x128xf32>
    %123 = arith.extui %122 : vector<2x8x128xi1> to vector<2x8x128xi32>
    %124 = arith.sitofp %123 : vector<2x8x128xi32> to vector<2x8x128xf32>
    %125 = vector.broadcast %0 : vector<2x1x128xf32> to vector<2x8x128xf32>
    %126 = arith.subf %66, %125 : vector<2x8x128xf32>
    %127 = math.absf %126 : vector<2x8x128xf32>
    %cst_58 = arith.constant 1.57079637 : f32
    %128 = vector.broadcast %cst_58 : f32 to vector<2x8x128xf32>
    %129 = arith.cmpf olt, %127, %128 : vector<2x8x128xf32>
    %130 = arith.extui %129 : vector<2x8x128xi1> to vector<2x8x128xi32>
    %131 = arith.sitofp %130 : vector<2x8x128xi32> to vector<2x8x128xf32>
    %cst_59 = arith.constant 0.000000e+00 : f32
    %132 = vector.broadcast %cst_59 : f32 to vector<2x8x128xf32>
    %133 = arith.cmpf ogt, %126, %132 : vector<2x8x128xf32>
    %134 = arith.extui %133 : vector<2x8x128xi1> to vector<2x8x128xi32>
    %135 = arith.sitofp %134 : vector<2x8x128xi32> to vector<2x8x128xf32>
    %136 = arith.subf %131, %135 : vector<2x8x128xf32>
    %cst_60 = arith.constant 1.000000e+00 : f32
    %137 = vector.broadcast %cst_60 : f32 to vector<2x8x128xf32>
    %138 = arith.subf %137, %131 : vector<2x8x128xf32>
    %139 = arith.mulf %135, %124 : vector<2x8x128xf32>
    %140 = arith.mulf %136, %124 : vector<2x8x128xf32>
    %141 = arith.mulf %138, %124 : vector<2x8x128xf32>
    %142 = arith.mulf %2, %2 : vector<2x8x128xf32>
    %143 = arith.mulf %4, %4 : vector<2x8x128xf32>
    %144 = arith.addf %142, %143 : vector<2x8x128xf32>
    %145 = math.sqrt %144 : vector<2x8x128xf32>
    %146 = vector.broadcast %0 : vector<2x1x128xf32> to vector<2x8x128xf32>
    %147 = arith.subf %120, %146 : vector<2x8x128xf32>
    %148 = arith.subf %2, %6 : vector<2x8x128xf32>
    %149 = arith.subf %4, %8 : vector<2x8x128xf32>
    %150 = arith.mulf %148, %148 : vector<2x8x128xf32>
    %151 = arith.mulf %149, %149 : vector<2x8x128xf32>
    %152 = arith.addf %150, %151 : vector<2x8x128xf32>
    %153 = math.sqrt %152 : vector<2x8x128xf32>
    %154 = arith.mulf %145, %140 : vector<2x8x128xf32>
    %155 = arith.mulf %147, %140 : vector<2x8x128xf32>
    %156 = arith.mulf %153, %140 : vector<2x8x128xf32>
    %157 = arith.mulf %145, %139 : vector<2x8x128xf32>
    %158 = arith.mulf %147, %139 : vector<2x8x128xf32>
    %159 = arith.mulf %153, %139 : vector<2x8x128xf32>
    %160 = arith.mulf %145, %141 : vector<2x8x128xf32>
    %cst_61 = arith.constant dense<0.000000e+00> : vector<2x128xf32>
    %161 = vector.multi_reduction <add>, %154, %cst_61 [1] : vector<2x8x128xf32> to vector<2x128xf32>
    %162 = vector.shape_cast %161 : vector<2x128xf32> to vector<2x1x128xf32>
    %cst_62 = arith.constant dense<0.000000e+00> : vector<2x1xf32>
    %163 = vector.multi_reduction <add>, %162, %cst_62 [2] : vector<2x1x128xf32> to vector<2x1xf32>
    %164 = vector.shape_cast %163 : vector<2x1xf32> to vector<2x1x1xf32>
    %cst_63 = arith.constant dense<0.000000e+00> : vector<2x128xf32>
    %165 = vector.multi_reduction <add>, %155, %cst_63 [1] : vector<2x8x128xf32> to vector<2x128xf32>
    %166 = vector.shape_cast %165 : vector<2x128xf32> to vector<2x1x128xf32>
    %cst_64 = arith.constant dense<0.000000e+00> : vector<2x1xf32>
    %167 = vector.multi_reduction <add>, %166, %cst_64 [2] : vector<2x1x128xf32> to vector<2x1xf32>
    %168 = vector.shape_cast %167 : vector<2x1xf32> to vector<2x1x1xf32>
    %cst_65 = arith.constant dense<0.000000e+00> : vector<2x128xf32>
    %169 = vector.multi_reduction <add>, %156, %cst_65 [1] : vector<2x8x128xf32> to vector<2x128xf32>
    %170 = vector.shape_cast %169 : vector<2x128xf32> to vector<2x1x128xf32>
    %cst_66 = arith.constant dense<0.000000e+00> : vector<2x1xf32>
    %171 = vector.multi_reduction <add>, %170, %cst_66 [2] : vector<2x1x128xf32> to vector<2x1xf32>
    %172 = vector.shape_cast %171 : vector<2x1xf32> to vector<2x1x1xf32>
    %cst_67 = arith.constant dense<0.000000e+00> : vector<2x128xf32>
    %173 = vector.multi_reduction <add>, %157, %cst_67 [1] : vector<2x8x128xf32> to vector<2x128xf32>
    %174 = vector.shape_cast %173 : vector<2x128xf32> to vector<2x1x128xf32>
    %cst_68 = arith.constant dense<0.000000e+00> : vector<2x1xf32>
    %175 = vector.multi_reduction <add>, %174, %cst_68 [2] : vector<2x1x128xf32> to vector<2x1xf32>
    %176 = vector.shape_cast %175 : vector<2x1xf32> to vector<2x1x1xf32>
    %cst_69 = arith.constant dense<0.000000e+00> : vector<2x128xf32>
    %177 = vector.multi_reduction <add>, %158, %cst_69 [1] : vector<2x8x128xf32> to vector<2x128xf32>
    %178 = vector.shape_cast %177 : vector<2x128xf32> to vector<2x1x128xf32>
    %cst_70 = arith.constant dense<0.000000e+00> : vector<2x1xf32>
    %179 = vector.multi_reduction <add>, %178, %cst_70 [2] : vector<2x1x128xf32> to vector<2x1xf32>
    %180 = vector.shape_cast %179 : vector<2x1xf32> to vector<2x1x1xf32>
    %cst_71 = arith.constant dense<0.000000e+00> : vector<2x128xf32>
    %181 = vector.multi_reduction <add>, %159, %cst_71 [1] : vector<2x8x128xf32> to vector<2x128xf32>
    %182 = vector.shape_cast %181 : vector<2x128xf32> to vector<2x1x128xf32>
    %cst_72 = arith.constant dense<0.000000e+00> : vector<2x1xf32>
    %183 = vector.multi_reduction <add>, %182, %cst_72 [2] : vector<2x1x128xf32> to vector<2x1xf32>
    %184 = vector.shape_cast %183 : vector<2x1xf32> to vector<2x1x1xf32>
    %cst_73 = arith.constant dense<0.000000e+00> : vector<2x128xf32>
    %185 = vector.multi_reduction <add>, %160, %cst_73 [1] : vector<2x8x128xf32> to vector<2x128xf32>
    %186 = vector.shape_cast %185 : vector<2x128xf32> to vector<2x1x128xf32>
    %cst_74 = arith.constant dense<0.000000e+00> : vector<2x1xf32>
    %187 = vector.multi_reduction <add>, %186, %cst_74 [2] : vector<2x1x128xf32> to vector<2x1xf32>
    %188 = vector.shape_cast %187 : vector<2x1xf32> to vector<2x1x1xf32>
    %cst_75 = arith.constant dense<0.000000e+00> : vector<2x128xf32>
    %189 = vector.multi_reduction <add>, %140, %cst_75 [1] : vector<2x8x128xf32> to vector<2x128xf32>
    %190 = vector.shape_cast %189 : vector<2x128xf32> to vector<2x1x128xf32>
    %cst_76 = arith.constant dense<0.000000e+00> : vector<2x1xf32>
    %191 = vector.multi_reduction <add>, %190, %cst_76 [2] : vector<2x1x128xf32> to vector<2x1xf32>
    %192 = vector.shape_cast %191 : vector<2x1xf32> to vector<2x1x1xf32>
    %cst_77 = arith.constant dense<0.000000e+00> : vector<2x128xf32>
    %193 = vector.multi_reduction <add>, %139, %cst_77 [1] : vector<2x8x128xf32> to vector<2x128xf32>
    %194 = vector.shape_cast %193 : vector<2x128xf32> to vector<2x1x128xf32>
    %cst_78 = arith.constant dense<0.000000e+00> : vector<2x1xf32>
    %195 = vector.multi_reduction <add>, %194, %cst_78 [2] : vector<2x1x128xf32> to vector<2x1xf32>
    %196 = vector.shape_cast %195 : vector<2x1xf32> to vector<2x1x1xf32>
    %cst_79 = arith.constant dense<0.000000e+00> : vector<2x128xf32>
    %197 = vector.multi_reduction <add>, %141, %cst_79 [1] : vector<2x8x128xf32> to vector<2x128xf32>
    %198 = vector.shape_cast %197 : vector<2x128xf32> to vector<2x1x128xf32>
    %cst_80 = arith.constant dense<0.000000e+00> : vector<2x1xf32>
    %199 = vector.multi_reduction <add>, %198, %cst_80 [2] : vector<2x1x128xf32> to vector<2x1xf32>
    %200 = vector.shape_cast %199 : vector<2x1xf32> to vector<2x1x1xf32>
    %cst_81 = arith.constant dense<0.000000e+00> : vector<1x1xf32>
    %201 = vector.multi_reduction <add>, %164, %cst_81 [0] : vector<2x1x1xf32> to vector<1x1xf32>
    %202 = vector.shape_cast %201 : vector<1x1xf32> to vector<1x1x1xf32>
    %cst_82 = arith.constant dense<0.000000e+00> : vector<1x1xf32>
    %203 = vector.multi_reduction <add>, %168, %cst_82 [0] : vector<2x1x1xf32> to vector<1x1xf32>
    %204 = vector.shape_cast %203 : vector<1x1xf32> to vector<1x1x1xf32>
    %cst_83 = arith.constant dense<0.000000e+00> : vector<1x1xf32>
    %205 = vector.multi_reduction <add>, %172, %cst_83 [0] : vector<2x1x1xf32> to vector<1x1xf32>
    %206 = vector.shape_cast %205 : vector<1x1xf32> to vector<1x1x1xf32>
    %cst_84 = arith.constant dense<0.000000e+00> : vector<1x1xf32>
    %207 = vector.multi_reduction <add>, %176, %cst_84 [0] : vector<2x1x1xf32> to vector<1x1xf32>
    %208 = vector.shape_cast %207 : vector<1x1xf32> to vector<1x1x1xf32>
    %cst_85 = arith.constant dense<0.000000e+00> : vector<1x1xf32>
    %209 = vector.multi_reduction <add>, %180, %cst_85 [0] : vector<2x1x1xf32> to vector<1x1xf32>
    %210 = vector.shape_cast %209 : vector<1x1xf32> to vector<1x1x1xf32>
    %cst_86 = arith.constant dense<0.000000e+00> : vector<1x1xf32>
    %211 = vector.multi_reduction <add>, %184, %cst_86 [0] : vector<2x1x1xf32> to vector<1x1xf32>
    %212 = vector.shape_cast %211 : vector<1x1xf32> to vector<1x1x1xf32>
    %cst_87 = arith.constant dense<0.000000e+00> : vector<1x1xf32>
    %213 = vector.multi_reduction <add>, %188, %cst_87 [0] : vector<2x1x1xf32> to vector<1x1xf32>
    %214 = vector.shape_cast %213 : vector<1x1xf32> to vector<1x1x1xf32>
    %215 = tpu.concatenate %202, %204, %206, %208, %210, %212, %214 in 1 : vector<1x1x1xf32>, vector<1x1x1xf32>, vector<1x1x1xf32>, vector<1x1x1xf32>, vector<1x1x1xf32>, vector<1x1x1xf32>, vector<1x1x1xf32> -> vector<1x7x1xf32>
    %cst_88 = arith.constant 9.99999974E-6 : f32
    %216 = vector.broadcast %cst_88 : f32 to vector<2x1x1xf32>
    %217 = arith.addf %192, %216 : vector<2x1x1xf32>
    %cst_89 = arith.constant 9.99999974E-6 : f32
    %218 = vector.broadcast %cst_89 : f32 to vector<2x1x1xf32>
    %219 = arith.addf %196, %218 : vector<2x1x1xf32>
    %cst_90 = arith.constant 9.99999974E-6 : f32
    %220 = vector.broadcast %cst_90 : f32 to vector<2x1x1xf32>
    %221 = arith.addf %200, %220 : vector<2x1x1xf32>
    %222 = vector.extract_strided_slice %215 {offsets = [0, 0, 0], sizes = [1, 1, 1], strides = [1, 1, 1]} : vector<1x7x1xf32> to vector<1x1x1xf32>
    %223 = vector.broadcast %222 : vector<1x1x1xf32> to vector<2x1x1xf32>
    %224 = arith.divf %223, %217 : vector<2x1x1xf32>
    %225 = vector.extract_strided_slice %215 {offsets = [0, 1, 0], sizes = [1, 1, 1], strides = [1, 1, 1]} : vector<1x7x1xf32> to vector<1x1x1xf32>
    %226 = vector.broadcast %225 : vector<1x1x1xf32> to vector<2x1x1xf32>
    %227 = arith.divf %226, %217 : vector<2x1x1xf32>
    %228 = vector.extract_strided_slice %215 {offsets = [0, 2, 0], sizes = [1, 1, 1], strides = [1, 1, 1]} : vector<1x7x1xf32> to vector<1x1x1xf32>
    %229 = vector.broadcast %228 : vector<1x1x1xf32> to vector<2x1x1xf32>
    %230 = arith.divf %229, %217 : vector<2x1x1xf32>
    %231 = vector.extract_strided_slice %215 {offsets = [0, 3, 0], sizes = [1, 1, 1], strides = [1, 1, 1]} : vector<1x7x1xf32> to vector<1x1x1xf32>
    %232 = vector.broadcast %231 : vector<1x1x1xf32> to vector<2x1x1xf32>
    %233 = arith.divf %232, %219 : vector<2x1x1xf32>
    %234 = vector.extract_strided_slice %215 {offsets = [0, 4, 0], sizes = [1, 1, 1], strides = [1, 1, 1]} : vector<1x7x1xf32> to vector<1x1x1xf32>
    %235 = vector.broadcast %234 : vector<1x1x1xf32> to vector<2x1x1xf32>
    %236 = arith.divf %235, %219 : vector<2x1x1xf32>
    %237 = vector.extract_strided_slice %215 {offsets = [0, 5, 0], sizes = [1, 1, 1], strides = [1, 1, 1]} : vector<1x7x1xf32> to vector<1x1x1xf32>
    %238 = vector.broadcast %237 : vector<1x1x1xf32> to vector<2x1x1xf32>
    %239 = arith.divf %238, %219 : vector<2x1x1xf32>
    %240 = vector.extract_strided_slice %215 {offsets = [0, 6, 0], sizes = [1, 1, 1], strides = [1, 1, 1]} : vector<1x7x1xf32> to vector<1x1x1xf32>
    %241 = vector.broadcast %240 : vector<1x1x1xf32> to vector<2x1x1xf32>
    %242 = arith.divf %241, %221 : vector<2x1x1xf32>
    %cst_91 = arith.constant 0.000000e+00 : f32
    %243 = vector.broadcast %cst_91 : f32 to vector<2x1x121xf32>
    %244 = tpu.concatenate %224, %227, %230, %233, %236, %239, %242, %243 in 2 : vector<2x1x1xf32>, vector<2x1x1xf32>, vector<2x1x1xf32>, vector<2x1x1xf32>, vector<2x1x1xf32>, vector<2x1x1xf32>, vector<2x1x1xf32>, vector<2x1x121xf32> -> vector<2x1x128xf32>
    %c0_92 = arith.constant 0 : index
    %c0_93 = arith.constant 0 : index
    %c0_94 = arith.constant 0 : index
    %245 = vector.load %arg3[%c0_92, %c0_93, %c0_94] : memref<2x1x128xf32, #tpu.memory_space<vmem>>, vector<2x1x128xf32>
    tpu.vector_store %arg3[%c0_92, %c0_93, %c0_94], %244 {strides = array<i32>} : memref<2x1x128xf32, #tpu.memory_space<vmem>>, vector<2x1x128xf32>,
    return
  }
  func.func @transform_0(%arg0: i32) -> (i32, i32, i32) {
    %c0_i32 = arith.constant 0 : i32
    %c0_i32_0 = arith.constant 0 : i32
    %c0_i32_1 = arith.constant 0 : i32
    %c0_i32_2 = arith.constant 0 : i32
    return %c0_i32, %c0_i32_0, %c0_i32_1 : i32, i32, i32
  }
  func.func @transform_1(%arg0: i32) -> (i32, i32, i32, i32) {
    %c0_i32 = arith.constant 0 : i32
    %c0_i32_0 = arith.constant 0 : i32
    %c0_i32_1 = arith.constant 0 : i32
    %c0_i32_2 = arith.constant 0 : i32
    %c0_i32_3 = arith.constant 0 : i32
    return %c0_i32, %c0_i32_0, %c0_i32_1, %c0_i32_2 : i32, i32, i32, i32
  }
  func.func @transform_2(%arg0: i32) -> (i32, i32, i32) {
    %c0_i32 = arith.constant 0 : i32
    %c0_i32_0 = arith.constant 0 : i32
    %c0_i32_1 = arith.constant 0 : i32
    %c0_i32_2 = arith.constant 0 : i32
    return %c0_i32, %c0_i32_0, %c0_i32_1 : i32, i32, i32
  }
}

</mosaic_0001>

<llo_original>
// kernel: conception_pallas.1
$region0: #{conception_pallas.1}
  #allocation0 [shape = 'u32[]', space=smem, size = 0x4, offset = 0x4, fixed_abs, tag = 'smem constant byte address 0x4 - core index']
  #allocation1 [shape = 'u32[144,128]{1,0:T(1,128)}', space=vmem, size = 0x12000, scoped, tag = 'internal scratch']
  %s0 = inlined_call_operand.vmem [shape: f32[2,1,128], index: 0, kind: input, shape index: {}]
  %s1 = inlined_call_operand.vmem [shape: f32[7,2,8,128], index: 1, kind: input, shape index: {}]
  %s2 = inlined_call_operand.hbm [shape: f32[2,1,128], index: 2, kind: output, shape index: {}]
  %s3 = sld [smem:[#allocation0]]
  $region18: #{conception_pallas.1} parent=0
    _
  %s5 = ssub.s32 1, %s3
  %s6 = scalar_select 0, %s5, %s3
  $region1: #{conception_pallas.1} parent=0
    #allocation2 [shape = 'u8[1024]{0}', space=vmem, size = 0x400, scoped, tag = 'output window, operand 0, single buffered']
    #allocation3 [shape = 's32[1]{0}', space=sflag, size = 0x4, scoped, tag = 'scoped memory for conception_pallas.1']
    %7 = vsyncpa [#allocation3], 0
    // Predicated region
    $region2: #{conception_pallas.1} parent=1 // pred_check
      _
    $region3: #{conception_pallas.1} parent=1 // pred_check_branch
      %9 = sbr.rel (0) target = $region5
    $region4: #{conception_pallas.1} parent=1 // pred_region
      _
    $region5: #{conception_pallas.1} parent=1 // pred_fallthru
      _
    // Predicated region
    $region6: #{conception_pallas.1} parent=1 // pred_check
      _
    $region7: #{conception_pallas.1} parent=1 // pred_check_branch
      %11 = sbr.rel (0) target = $region9
    $region8: #{conception_pallas.1} parent=1 // pred_region
      _
    $region9: #{conception_pallas.1} parent=1 // pred_fallthru
      _
    %v12 = vld [vmem:[%s0] sm:$0x1]
    %v13 = vld [vmem:[%s0 + $0x1] sm:$0x1]
    %v14 = vld [vmem:[%s1] sm:$0xff]
    %v15 = vld [vmem:[%s1 + $0x8] sm:$0xff]
    %s16 = scalar_lea.vmem %s1, 16
    %v17 = vld [vmem:[%s16] sm:$0xff]
    %v18 = vld [vmem:[%s16 + $0x8] sm:$0xff]
    %s19 = scalar_lea.vmem %s1, 32
    %v20 = vld [vmem:[%s19] sm:$0xff]
    %v21 = vld [vmem:[%s19 + $0x8] sm:$0xff]
    %s22 = scalar_lea.vmem %s1, 48
    %v23 = vld [vmem:[%s22] sm:$0xff]
    %v24 = vld [vmem:[%s22 + $0x8] sm:$0xff]
    %s25 = scalar_lea.vmem %s1, 64
    %v26 = vld [vmem:[%s25] sm:$0xff]
    %v27 = vld [vmem:[%s25 + $0x8] sm:$0xff]
    %s28 = scalar_lea.vmem %s1, 80
    %v29 = vld [vmem:[%s28] sm:$0xff]
    %v30 = vld [vmem:[%s28 + $0x8] sm:$0xff]
    %s31 = scalar_lea.vmem %s1, 96
    %v32 = vld [vmem:[%s31] sm:$0xff]
    %v33 = vld [vmem:[%s31 + $0x8] sm:$0xff]
    %v34 = vand.u32 2147483647, %v17
    %v35 = vand.u32 2147483647, %v18
    %v36 = vand.u32 2147483647, %v14
    %v37 = vand.u32 2147483647, %v15
    %v38 = vmin.f32 %v34, %v36
    %v39 = vmin.f32 %v35, %v37
    %v40 = vmax.f32 %v34, %v36
    %v41 = vmax.f32 %v35, %v37
    %v42 = vmax.f32 %v40, 1e-30
    %v43 = vmax.f32 %v41, 1e-30
    %v44 = vrcp.pop %v42
    %v45 = vmul.f32 %v38, %v44
    %v46 = vrcp.pop %v43
    %v47 = vmul.f32 %v39, %v46
    %vm48 = vcmp.gt.f32.partialorder %v45, 0.41421357
    %vm49 = vcmp.gt.f32.partialorder %v47, 0.41421357
    %v50 = vsub.f32 %v45, 1.0
    %v51 = vsub.f32 %v47, 1.0
    %v52 = vadd.f32 %v45, 1.0
    %v53 = vadd.f32 %v47, 1.0
    %v54 = vrcp.pop %v52
    %v55 = vmul.f32 %v50, %v54
    %v56 = vrcp.pop %v53
    %v57 = vmul.f32 %v51, %v56
    %v58 = vsel %vm48, %v55, %v45
    %v59 = vsel %vm49, %v57, %v47
    %v60 = vsel %vm48, 0.7853982, 0.0
    %v61 = vsel %vm49, 0.7853982, 0.0
    %v62 = vmul.f32 %v58, %v58
    %v63 = vmul.f32 %v59, %v59
    %v64 = vmul.f32 %v62, 0.080537446
    %v65 = vmul.f32 %v63, 0.080537446
    %v66 = vsub.f32 %v64, 0.13877685
    %v67 = vsub.f32 %v65, 0.13877685
    %v68 = vmul.f32 %v66, %v62
    %v69 = vmul.f32 %v67, %v63
    %v70 = vadd.f32 %v68, 0.19977711
    %v71 = vadd.f32 %v69, 0.19977711
    %v72 = vmul.f32 %v70, %v62
    %v73 = vmul.f32 %v71, %v63
    %v74 = vsub.f32 %v72, 0.3333295
    %v75 = vsub.f32 %v73, 0.3333295
    %v76 = vmul.f32 %v74, %v62
    %v77 = vmul.f32 %v75, %v63
    %v78 = vmul.f32 %v76, %v58
    %v79 = vmul.f32 %v77, %v59
    %v80 = vadd.f32 %v78, %v58
    %v81 = vadd.f32 %v79, %v59
    %v82 = vadd.f32 %v60, %v80
    %v83 = vadd.f32 %v61, %v81
    %vm84 = vcmp.gt.f32.partialorder %v36, %v34
    %vm85 = vcmp.gt.f32.partialorder %v37, %v35
    %v86 = vsub.f32 1.5707964, %v82
    %v87 = vsub.f32 1.5707964, %v83
    %v88 = vsel %vm84, %v86, %v82
    %v89 = vsel %vm85, %v87, %v83
    %vm90 = vcmp.lt.f32.partialorder %v17, 0.0
    %vm91 = vcmp.lt.f32.partialorder %v18, 0.0
    %v92 = vsub.f32 3.1415927, %v88
    %v93 = vsub.f32 3.1415927, %v89
    %v94 = vsel %vm90, %v92, %v88
    %v95 = vsel %vm91, %v93, %v89
    %vm96 = vcmp.lt.f32.partialorder %v14, 0.0
    %vm97 = vcmp.lt.f32.partialorder %v15, 0.0
    %v98 = vsub.f32 0.0, %v94
    %v99 = vsub.f32 0.0, %v95
    %v100 = vsel %vm96, %v98, %v94
    %v101 = vsel %vm97, %v99, %v95
    %vm102 = vcmp.lt.f32.partialorder %v100, 0.0
    %vm103 = vcmp.lt.f32.partialorder %v101, 0.0
    %v104 = vadd.f32 %v100, 6.2831855
    %v105 = vadd.f32 %v101, 6.2831855
    %v106 = vsel %vm102, %v104, %v100
    %v107 = vsel %vm103, %v105, %v101
    %v108 = vsub.f32 %v14, %v26
    %v109 = vsub.f32 %v15, %v27
    %v110 = vsub.f32 %v17, %v29
    %v111 = vsub.f32 %v18, %v30
    %v112 = vand.u32 2147483647, %v110
    %v113 = vand.u32 2147483647, %v111
    %v114 = vand.u32 2147483647, %v108
    %v115 = vand.u32 2147483647, %v109
    %v116 = vmin.f32 %v112, %v114
    %v117 = vmin.f32 %v113, %v115
    %v118 = vmax.f32 %v112, %v114
    %v119 = vmax.f32 %v113, %v115
    %v120 = vmax.f32 %v118, 1e-30
    %v121 = vmax.f32 %v119, 1e-30
    %v122 = vrcp.pop %v120
    %v123 = vmul.f32 %v116, %v122
    %v124 = vrcp.pop %v121
    %v125 = vmul.f32 %v117, %v124
    %vm126 = vcmp.gt.f32.partialorder %v123, 0.41421357
    %vm127 = vcmp.gt.f32.partialorder %v125, 0.41421357
    %v128 = vsub.f32 %v123, 1.0
    %v129 = vsub.f32 %v125, 1.0
    %v130 = vadd.f32 %v123, 1.0
    %v131 = vadd.f32 %v125, 1.0
    %v132 = vrcp.pop %v130
    %v133 = vmul.f32 %v128, %v132
    %v134 = vrcp.pop %v131
    %v135 = vmul.f32 %v129, %v134
    %v136 = vsel %vm126, %v133, %v123
    %v137 = vsel %vm127, %v135, %v125
    %v138 = vsel %vm126, 0.7853982, 0.0
    %v139 = vsel %vm127, 0.7853982, 0.0
    %v140 = vmul.f32 %v136, %v136
    %v141 = vmul.f32 %v137, %v137
    %v142 = vmul.f32 %v140, 0.080537446
    %v143 = vmul.f32 %v141, 0.080537446
    %v144 = vsub.f32 %v142, 0.13877685
    %v145 = vsub.f32 %v143, 0.13877685
    %v146 = vmul.f32 %v144, %v140
    %v147 = vmul.f32 %v145, %v141
    %v148 = vadd.f32 %v146, 0.19977711
    %v149 = vadd.f32 %v147, 0.19977711
    %v150 = vmul.f32 %v148, %v140
    %v151 = vmul.f32 %v149, %v141
    %v152 = vsub.f32 %v150, 0.3333295
    %v153 = vsub.f32 %v151, 0.3333295
    %v154 = vmul.f32 %v152, %v140
    %v155 = vmul.f32 %v153, %v141
    %v156 = vmul.f32 %v154, %v136
    %v157 = vmul.f32 %v155, %v137
    %v158 = vadd.f32 %v156, %v136
    %v159 = vadd.f32 %v157, %v137
    %v160 = vadd.f32 %v138, %v158
    %v161 = vadd.f32 %v139, %v159
    %vm162 = vcmp.gt.f32.partialorder %v114, %v112
    %vm163 = vcmp.gt.f32.partialorder %v115, %v113
    %v164 = vsub.f32 1.5707964, %v160
    %v165 = vsub.f32 1.5707964, %v161
    %v166 = vsel %vm162, %v164, %v160
    %v167 = vsel %vm163, %v165, %v161
    %vm168 = vcmp.lt.f32.partialorder %v110, 0.0
    %vm169 = vcmp.lt.f32.partialorder %v111, 0.0
    %v170 = vsub.f32 3.1415927, %v166
    %v171 = vsub.f32 3.1415927, %v167
    %v172 = vsel %vm168, %v170, %v166
    %v173 = vsel %vm169, %v171, %v167
    %vm174 = vcmp.lt.f32.partialorder %v108, 0.0
    %vm175 = vcmp.lt.f32.partialorder %v109, 0.0
    %v176 = vsub.f32 0.0, %v172
    %v177 = vsub.f32 0.0, %v173
    %v178 = vsel %vm174, %v176, %v172
    %v179 = vsel %vm175, %v177, %v173
    %vm180 = vcmp.lt.f32.partialorder %v178, 0.0
    %vm181 = vcmp.lt.f32.partialorder %v179, 0.0
    %v182 = vadd.f32 %v178, 6.2831855
    %v183 = vadd.f32 %v179, 6.2831855
    %v184 = vsel %vm180, %v182, %v178
    %v185 = vsel %vm181, %v183, %v179
    %vm186 = vcmp.lt.f32.partialorder %v32, 5000000.0
    %vm187 = vcmp.lt.f32.partialorder %v33, 5000000.0
    %v188 = vsel %vm186, 1, 0
    %v189 = vsel %vm187, 1, 0
    %v190 = vcvt.s32.f32 %v188
    %v191 = vcvt.s32.f32 %v189
    %v194 = vlaneseq
    %v195 = vshrl.u32 %v194, 7
    %v196 = vsub.s32 0, %v195
    %v197 = vrot.slane %v12, %v196
    %v198 = vlaneseq
    %v199 = vshrl.u32 %v198, 7
    %v200 = vsub.s32 0, %v199
    %v201 = vrot.slane %v13, %v200
    %v204 = vsub.f32 %v106, %v197
    %v205 = vsub.f32 %v107, %v201
    %v206 = vand.u32 2147483647, %v204
    %v207 = vand.u32 2147483647, %v205
    %vm208 = vcmp.lt.f32.partialorder %v206, 1.5707964
    %vm209 = vcmp.lt.f32.partialorder %v207, 1.5707964
    %v210 = vsel %vm208, 1, 0
    %v211 = vsel %vm209, 1, 0
    %v212 = vcvt.s32.f32 %v210
    %v213 = vcvt.s32.f32 %v211
    %vm214 = vcmp.gt.f32.partialorder %v204, 0.0
    %vm215 = vcmp.gt.f32.partialorder %v205, 0.0
    %v216 = vsel %vm214, 1, 0
    %v217 = vsel %vm215, 1, 0
    %v218 = vcvt.s32.f32 %v216
    %v219 = vcvt.s32.f32 %v217
    %v220 = vsub.f32 %v212, %v218
    %v221 = vsub.f32 %v213, %v219
    %v222 = vsub.f32 1.0, %v212
    %v223 = vsub.f32 1.0, %v213
    %v224 = vmul.f32 %v218, %v190
    %v225 = vmul.f32 %v219, %v191
    %v226 = vmul.f32 %v220, %v190
    %v227 = vmul.f32 %v221, %v191
    %v228 = vmul.f32 %v222, %v190
    %v229 = vmul.f32 %v223, %v191
    %v230 = vmul.f32 %v14, %v14
    %v231 = vmul.f32 %v15, %v15
    %v232 = vmul.f32 %v17, %v17
    %v233 = vmul.f32 %v18, %v18
    %v234 = vadd.f32 %v230, %v232
    %v235 = vadd.f32 %v231, %v233
    %v236 = vrsqrt.pop %v234
    %v237 = vmul.f32 %v234, %v236
    %vm238 = vcmp.eq.f32.partialorder %v234, inf
    %v239 = vsel %vm238, %v234, %v237
    %vm240 = vcmp.eq.f32.partialorder %v234, 0.0
    %v241 = vand.u32 %v234, 2147483648
    %v242 = vsel %vm240, %v241, %v239
    %v243 = vrsqrt.pop %v235
    %v244 = vmul.f32 %v235, %v243
    %vm245 = vcmp.eq.f32.partialorder %v235, inf
    %v246 = vsel %vm245, %v235, %v244
    %vm247 = vcmp.eq.f32.partialorder %v235, 0.0
    %v248 = vand.u32 %v235, 2147483648
    %v249 = vsel %vm247, %v248, %v246
    %v250 = vsub.f32 %v184, %v197
    %v251 = vsub.f32 %v185, %v201
    %v252 = vsub.f32 %v14, %v20
    %v253 = vsub.f32 %v15, %v21
    %v254 = vsub.f32 %v17, %v23
    %v255 = vsub.f32 %v18, %v24
    %v256 = vmul.f32 %v252, %v252
    %v257 = vmul.f32 %v253, %v253
    %v258 = vmul.f32 %v254, %v254
    %v259 = vmul.f32 %v255, %v255
    %v260 = vadd.f32 %v256, %v258
    %v261 = vadd.f32 %v257, %v259
    %v262 = vrsqrt.pop %v260
    %v263 = vmul.f32 %v260, %v262
    %vm264 = vcmp.eq.f32.partialorder %v260, inf
    %v265 = vsel %vm264, %v260, %v263
    %vm266 = vcmp.eq.f32.partialorder %v260, 0.0
    %v267 = vand.u32 %v260, 2147483648
    %v268 = vsel %vm266, %v267, %v265
    %v269 = vrsqrt.pop %v261
    %v270 = vmul.f32 %v261, %v269
    %vm271 = vcmp.eq.f32.partialorder %v261, inf
    %v272 = vsel %vm271, %v261, %v270
    %vm273 = vcmp.eq.f32.partialorder %v261, 0.0
    %v274 = vand.u32 %v261, 2147483648
    %v275 = vsel %vm273, %v274, %v272
    %v276 = vmul.f32 %v242, %v226
    %v277 = vmul.f32 %v249, %v227
    %v278 = vmul.f32 %v250, %v226
    %v279 = vmul.f32 %v251, %v227
    %v280 = vmul.f32 %v268, %v226
    %v281 = vmul.f32 %v275, %v227
    %v282 = vmul.f32 %v242, %v224
    %v283 = vmul.f32 %v249, %v225
    %v284 = vmul.f32 %v250, %v224
    %v285 = vmul.f32 %v251, %v225
    %v286 = vmul.f32 %v268, %v224
    %v287 = vmul.f32 %v275, %v225
    %v288 = vmul.f32 %v242, %v228
    %v289 = vmul.f32 %v249, %v229
    %v290 = vrot.slane %v276, 4
    %v291 = vadd.f32 %v276, %v290
    %v292 = vrot.slane %v291, 2
    %v293 = vadd.f32 %v291, %v292
    %v294 = vrot.slane %v293, 1
    %v295 = vadd.f32 %v293, %v294
    %v296 = vrot.slane %v277, 4
    %v297 = vadd.f32 %v277, %v296
    %v298 = vrot.slane %v297, 2
    %v299 = vadd.f32 %v297, %v298
    %v300 = vrot.slane %v299, 1
    %v301 = vadd.f32 %v299, %v300
    %302 = vadd.xlane.f32.xlu0 %v295
    %v303 = vpop.xlane.xlu0 %302
    %304 = vadd.xlane.f32.xlu0 %v301
    %v305 = vpop.xlane.xlu0 %304
    %v306 = vrot.slane %v278, 4
    %v307 = vadd.f32 %v278, %v306
    %v308 = vrot.slane %v307, 2
    %v309 = vadd.f32 %v307, %v308
    %v310 = vrot.slane %v309, 1
    %v311 = vadd.f32 %v309, %v310
    %v312 = vrot.slane %v279, 4
    %v313 = vadd.f32 %v279, %v312
    %v314 = vrot.slane %v313, 2
    %v315 = vadd.f32 %v313, %v314
    %v316 = vrot.slane %v315, 1
    %v317 = vadd.f32 %v315, %v316
    %318 = vadd.xlane.f32.xlu0 %v311
    %v319 = vpop.xlane.xlu0 %318
    %320 = vadd.xlane.f32.xlu0 %v317
    %v321 = vpop.xlane.xlu0 %320
    %v322 = vrot.slane %v280, 4
    %v323 = vadd.f32 %v280, %v322
    %v324 = vrot.slane %v323, 2
    %v325 = vadd.f32 %v323, %v324
    %v326 = vrot.slane %v325, 1
    %v327 = vadd.f32 %v325, %v326
    %v328 = vrot.slane %v281, 4
    %v329 = vadd.f32 %v281, %v328
    %v330 = vrot.slane %v329, 2
    %v331 = vadd.f32 %v329, %v330
    %v332 = vrot.slane %v331, 1
    %v333 = vadd.f32 %v331, %v332
    %334 = vadd.xlane.f32.xlu0 %v327
    %v335 = vpop.xlane.xlu0 %334
    %336 = vadd.xlane.f32.xlu0 %v333
    %v337 = vpop.xlane.xlu0 %336
    %v338 = vrot.slane %v282, 4
    %v339 = vadd.f32 %v282, %v338
    %v340 = vrot.slane %v339, 2
    %v341 = vadd.f32 %v339, %v340
    %v342 = vrot.slane %v341, 1
    %v343 = vadd.f32 %v341, %v342
    %v344 = vrot.slane %v283, 4
    %v345 = vadd.f32 %v283, %v344
    %v346 = vrot.slane %v345, 2
    %v347 = vadd.f32 %v345, %v346
    %v348 = vrot.slane %v347, 1
    %v349 = vadd.f32 %v347, %v348
    %350 = vadd.xlane.f32.xlu0 %v343
    %v351 = vpop.xlane.xlu0 %350
    %352 = vadd.xlane.f32.xlu0 %v349
    %v353 = vpop.xlane.xlu0 %352
    %v354 = vrot.slane %v284, 4
    %v355 = vadd.f32 %v284, %v354
    %v356 = vrot.slane %v355, 2
    %v357 = vadd.f32 %v355, %v356
    %v358 = vrot.slane %v357, 1
    %v359 = vadd.f32 %v357, %v358
    %v360 = vrot.slane %v285, 4
    %v361 = vadd.f32 %v285, %v360
    %v362 = vrot.slane %v361, 2
    %v363 = vadd.f32 %v361, %v362
    %v364 = vrot.slane %v363, 1
    %v365 = vadd.f32 %v363, %v364
    %366 = vadd.xlane.f32.xlu0 %v359
    %v367 = vpop.xlane.xlu0 %366
    %368 = vadd.xlane.f32.xlu0 %v365
    %v369 = vpop.xlane.xlu0 %368
    %v370 = vrot.slane %v286, 4
    %v371 = vadd.f32 %v286, %v370
    %v372 = vrot.slane %v371, 2
    %v373 = vadd.f32 %v371, %v372
    %v374 = vrot.slane %v373, 1
    %v375 = vadd.f32 %v373, %v374
    %v376 = vrot.slane %v287, 4
    %v377 = vadd.f32 %v287, %v376
    %v378 = vrot.slane %v377, 2
    %v379 = vadd.f32 %v377, %v378
    %v380 = vrot.slane %v379, 1
    %v381 = vadd.f32 %v379, %v380
    %382 = vadd.xlane.f32.xlu0 %v375
    %v383 = vpop.xlane.xlu0 %382
    %384 = vadd.xlane.f32.xlu0 %v381
    %v385 = vpop.xlane.xlu0 %384
    %v386 = vrot.slane %v288, 4
    %v387 = vadd.f32 %v288, %v386
    %v388 = vrot.slane %v387, 2
    %v389 = vadd.f32 %v387, %v388
    %v390 = vrot.slane %v389, 1
    %v391 = vadd.f32 %v389, %v390
    %v392 = vrot.slane %v289, 4
    %v393 = vadd.f32 %v289, %v392
    %v394 = vrot.slane %v393, 2
    %v395 = vadd.f32 %v393, %v394
    %v396 = vrot.slane %v395, 1
    %v397 = vadd.f32 %v395, %v396
    %398 = vadd.xlane.f32.xlu0 %v391
    %v399 = vpop.xlane.xlu0 %398
    %400 = vadd.xlane.f32.xlu0 %v397
    %v401 = vpop.xlane.xlu0 %400
    %v402 = vrot.slane %v226, 4
    %v403 = vadd.f32 %v226, %v402
    %v404 = vrot.slane %v403, 2
    %v405 = vadd.f32 %v403, %v404
    %v406 = vrot.slane %v405, 1
    %v407 = vadd.f32 %v405, %v406
    %v408 = vrot.slane %v227, 4
    %v409 = vadd.f32 %v227, %v408
    %v410 = vrot.slane %v409, 2
    %v411 = vadd.f32 %v409, %v410
    %v412 = vrot.slane %v411, 1
    %v413 = vadd.f32 %v411, %v412
    %414 = vadd.xlane.f32.xlu0 %v407
    %v415 = vpop.xlane.xlu0 %414
    %416 = vadd.xlane.f32.xlu0 %v413
    %v417 = vpop.xlane.xlu0 %416
    %v418 = vrot.slane %v224, 4
    %v419 = vadd.f32 %v224, %v418
    %v420 = vrot.slane %v419, 2
    %v421 = vadd.f32 %v419, %v420
    %v422 = vrot.slane %v421, 1
    %v423 = vadd.f32 %v421, %v422
    %v424 = vrot.slane %v225, 4
    %v425 = vadd.f32 %v225, %v424
    %v426 = vrot.slane %v425, 2
    %v427 = vadd.f32 %v425, %v426
    %v428 = vrot.slane %v427, 1
    %v429 = vadd.f32 %v427, %v428
    %430 = vadd.xlane.f32.xlu0 %v423
    %v431 = vpop.xlane.xlu0 %430
    %432 = vadd.xlane.f32.xlu0 %v429
    %v433 = vpop.xlane.xlu0 %432
    %v434 = vrot.slane %v228, 4
    %v435 = vadd.f32 %v228, %v434
    %v436 = vrot.slane %v435, 2
    %v437 = vadd.f32 %v435, %v436
    %v438 = vrot.slane %v437, 1
    %v439 = vadd.f32 %v437, %v438
    %v440 = vrot.slane %v229, 4
    %v441 = vadd.f32 %v229, %v440
    %v442 = vrot.slane %v441, 2
    %v443 = vadd.f32 %v441, %v442
    %v444 = vrot.slane %v443, 1
    %v445 = vadd.f32 %v443, %v444
    %446 = vadd.xlane.f32.xlu0 %v439
    %v447 = vpop.xlane.xlu0 %446
    %448 = vadd.xlane.f32.xlu0 %v445
    %v449 = vpop.xlane.xlu0 %448
    %v450 = vadd.f32 %v303, %v305
    %v451 = vadd.f32 %v319, %v321
    %v452 = vadd.f32 %v335, %v337
    %v453 = vadd.f32 %v351, %v353
    %v454 = vadd.f32 %v367, %v369
    %v455 = vadd.f32 %v383, %v385
    %v456 = vadd.f32 %v399, %v401
    %vm457 = vcmask 1040384
    %v458 = vsel %vm457, %v450, %v451
    %vm459 = vcmask 1041408
    %v460 = vsel %vm459, %v458, %v452
    %vm461 = vcmask 1042432
    %v462 = vsel %vm461, %v460, %v453
    %vm463 = vcmask 1043456
    %v464 = vsel %vm463, %v462, %v454
    %vm465 = vcmask 1044480
    %v466 = vsel %vm465, %v464, %v455
    %vm467 = vcmask 1045504
    %v468 = vsel %vm467, %v466, %v456
    %v469 = vadd.f32 %v415, 1e-05
    %v470 = vadd.f32 %v417, 1e-05
    %v471 = vadd.f32 %v431, 1e-05
    %v472 = vadd.f32 %v433, 1e-05
    %v473 = vadd.f32 %v447, 1e-05
    %v474 = vadd.f32 %v449, 1e-05
    %v475 = vrcp.pop %v469
    %v476 = vmul.f32 %v468, %v475
    %v477 = vrcp.pop %v470
    %v478 = vmul.f32 %v468, %v477
    %v479 = vrcp.pop %v471
    %v480 = vmul.f32 %v468, %v479
    %v481 = vrcp.pop %v472
    %v482 = vmul.f32 %v468, %v481
    %v483 = vrcp.pop %v473
    %v484 = vmul.f32 %v468, %v483
    %v485 = vrcp.pop %v474
    %v486 = vmul.f32 %v468, %v485
    %v489 = vrot.slane %v476, 1
    %v490 = vrot.slane %v478, 1
    %491 = vrot.lane.b32.xlu0 %v489, 1
    %v492 = vpop.permute.xlu0 %491
    %493 = vrot.lane.b32.xlu0 %v490, 1
    %v494 = vpop.permute.xlu0 %493
    %v497 = vrot.slane %v476, 2
    %v498 = vrot.slane %v478, 2
    %499 = vrot.lane.b32.xlu0 %v497, 2
    %v500 = vpop.permute.xlu0 %499
    %501 = vrot.lane.b32.xlu0 %v498, 2
    %v502 = vpop.permute.xlu0 %501
    %v507 = vrot.slane %v480, 3
    %v508 = vrot.slane %v482, 3
    %509 = vrot.lane.b32.xlu0 %v507, 3
    %v510 = vpop.permute.xlu0 %509
    %511 = vrot.lane.b32.xlu0 %v508, 3
    %v512 = vpop.permute.xlu0 %511
    %v515 = vrot.slane %v480, 4
    %v516 = vrot.slane %v482, 4
    %517 = vrot.lane.b32.xlu0 %v515, 4
    %v518 = vpop.permute.xlu0 %517
    %519 = vrot.lane.b32.xlu0 %v516, 4
    %v520 = vpop.permute.xlu0 %519
    %v523 = vrot.slane %v480, 5
    %v524 = vrot.slane %v482, 5
    %525 = vrot.lane.b32.xlu0 %v523, 5
    %v526 = vpop.permute.xlu0 %525
    %527 = vrot.lane.b32.xlu0 %v524, 5
    %v528 = vpop.permute.xlu0 %527
    %v533 = vrot.slane %v484, 6
    %v534 = vrot.slane %v486, 6
    %535 = vrot.lane.b32.xlu0 %v533, 6
    %v536 = vpop.permute.xlu0 %535
    %537 = vrot.lane.b32.xlu0 %v534, 6
    %v538 = vpop.permute.xlu0 %537
    %vm541 = vcmask 7168
    %v542 = vsel %vm541, %v476, %v492
    %v543 = vsel %vm541, %v478, %v494
    %vm544 = vcmask 15360
    %v545 = vsel %vm544, %v542, %v500
    %v546 = vsel %vm544, %v543, %v502
    %vm547 = vcmask 23552
    %v548 = vsel %vm547, %v545, %v510
    %v549 = vsel %vm547, %v546, %v512
    %vm550 = vcmask 31744
    %v551 = vsel %vm550, %v548, %v518
    %v552 = vsel %vm550, %v549, %v520
    %vm553 = vcmask 39936
    %v554 = vsel %vm553, %v551, %v526
    %v555 = vsel %vm553, %v552, %v528
    %vm556 = vcmask 48128
    %v557 = vsel %vm556, %v554, %v536
    %v558 = vsel %vm556, %v555, %v538
    %vm559 = vcmask 56320
    %v560 = vsel %vm559, %v557, 0.0
    %v561 = vsel %vm559, %v558, 0.0
    %562 = vst [vmem:[#allocation2] sm:$0x1] %v560
    %563 = vst [vmem:[#allocation2 + $0x1] sm:$0x1] %v561
    // Predicated region
    $region10: #{conception_pallas.1} parent=1 // pred_check
      _
    $region11: #{conception_pallas.1} parent=1 // pred_check_branch
      %565 = sbr.rel (0) target = $region13
    $region12: #{conception_pallas.1} parent=1 // pred_region
      %s567 = ssub.s32 32, 32
      %568 = vsyncadd [#allocation3], %s567
      %s569 = sshll.u32 [#allocation2], 4
      %s570 = int_to_ptr.vmem [resolvable:$true] %s569
      %575 = dma.vmem_to_hbm [thread:$0]  %s570, 32, %s2, [#allocation3], 16, 16, 1
    $region13: #{conception_pallas.1} parent=1 // pred_fallthru
      _
    // Predicated region
    $region14: #{conception_pallas.1} parent=1 // pred_check
      _
    $region15: #{conception_pallas.1} parent=1 // pred_check_branch
      %577 = sbr.rel (0) target = $region17
    $region16: #{conception_pallas.1} parent=1 // pred_region
      %578 = dma.done [#allocation3], 32
    $region17: #{conception_pallas.1} parent=1 // pred_fallthru
      _
    %579 = vsyncpa [#allocation3], 1

</llo_original>
